<compile_context>
chip_gen: v6e
topology: v6e:2x2x1
jax: 0.10.0
libtpu: 0.0.40
codegen_flags: <defaults>
</compile_context>

<pallas_src>
import math

import jax
import jax.numpy as jnp
from jax.experimental import pallas as pl
from jax.experimental.pallas import tpu as pltpu

_INV_SQRT2 = 1.0 / math.sqrt(2.0)
_MiB = 1024 * 1024


def _round_up(x, m):
    return (x + m - 1) // m * m


# -----------------------------------------------------------------------------
# Kernels
# -----------------------------------------------------------------------------

def _gelu_exact_f32(h):
    # Exact GELU (PyTorch nn.GELU default): 0.5 * x * (1 + erf(x / sqrt(2))).
    # Kept in f32 for exact parity with the reference module.
    # TODO(synk): optionally run the erf chain in bf16 on v6e/v7x (2x VALU rate) when
    #             the accuracy budget allows.
    return 0.5 * h * (1.0 + jax.lax.erf(h * _INV_SQRT2))


def _mlp_kernel_resident(x_ref, w1_ref, b1_ref, w2_ref, b2_ref, o_ref):
    # Grid: (row tiles,).  W1/b1/W2/b2 are grid-invariant (resident in VMEM, DMA'd once
    # per core), so both matmuls run back-to-back on the MXU with no weight re-stream.
    h = jnp.dot(x_ref[...], w1_ref[...], preferred_element_type=jnp.float32)
    h = _gelu_exact_f32(h + b1_ref[...].astype(jnp.float32))
    # dropout(p=0.0) == identity
    h = h.astype(x_ref.dtype)                      # MXU-native operand for fc2
    o = jnp.dot(h, w2_ref[...], preferred_element_type=jnp.float32)
    o_ref[...] = (o + b2_ref[...].astype(jnp.float32)).astype(o_ref.dtype)
    # dropout(p=0.0) == identity


def _mlp_kernel_hchunk(x_ref, w1_ref, b1_ref, w2_ref, b2_ref, o_ref, acc_ref):
    # Grid: (row tiles, H chunks).  W1 is column-tiled / W2 row-tiled along H; fc2 is
    # accumulated over the H chunks into an f32 VMEM scratch.
    # NOTE: correctness of acc_ref / the deferred o_ref write requires the H-chunk axis
    # (axis 1) to stay the innermost, sequentially iterated ("arbitrary") grid axis.
    k = pl.program_id(1)

    @pl.when(k == 0)
    def _():
        acc_ref[...] = jnp.zeros_like(acc_ref)

    h = jnp.dot(x_ref[...], w1_ref[...], preferred_element_type=jnp.float32)
    h = _gelu_exact_f32(h + b1_ref[...].astype(jnp.float32))
    # dropout(p=0.0) == identity
    acc_ref[...] += jnp.dot(h.astype(x_ref.dtype), w2_ref[...],
                            preferred_element_type=jnp.float32)

    @pl.when(k == pl.num_programs(1) - 1)
    def _():
        o_ref[...] = (acc_ref[...] + b2_ref[...].astype(jnp.float32)).astype(o_ref.dtype)
        # dropout(p=0.0) == identity


# -----------------------------------------------------------------------------
# Tiling / VMEM planning
# -----------------------------------------------------------------------------

def _vmem_limits():
    """Returns (vmem_limit_bytes handed to Mosaic, budget for our own buffers)."""
    cap = 64 * _MiB                               # conservative default (v7x per-TC)
    try:
        cap = int(pltpu.get_tpu_info().vmem_capacity_bytes)
    except Exception:
        pass
    # ~100 MiB on 128 MiB parts (v5e/v6e), ~48 MiB on v7x's 64 MiB.
    limit = max(32 * _MiB, min(cap - 16 * _MiB, 100 * _MiB))
    budget = limit - 6 * _MiB                     # headroom for compiler-internal use
    return limit, budget


def _resident_bytes(tile_m, c_in_p, h_p, c_out_p, itemsize):
    # Pallas double-buffers every BlockSpec (even grid-invariant weights, which are only
    # DMA'd once per core but still cost 2x the allocation) -- account for it honestly.
    # TODO(synk): single-buffer the invariant W1/b1/W2/b2 (pipeline_mode=pl.Buffered(1))
    #             to halve their footprint once the VMEM budget becomes binding.
    bufs = (tile_m * c_in_p                      # x row tile
            + c_in_p * h_p + h_p                 # W1, b1 (resident)
            + h_p * c_out_p + c_out_p            # W2, b2 (resident)
            + tile_m * c_out_p)                  # out row tile
    return 2 * itemsize * bufs + 8 * tile_m * h_p   # + f32 fc1/GELU intermediates


def _hchunk_bytes(tile_m, tile_h, c_in_p, c_out_p, itemsize):
    bufs = (tile_m * c_in_p                      # x row tile
            + c_in_p * tile_h + tile_h           # W1 column chunk, b1 chunk
            + tile_h * c_out_p + c_out_p         # W2 row chunk, b2
            + tile_m * c_out_p)                  # out row tile
    return (2 * itemsize * bufs
            + 4 * tile_m * c_out_p               # f32 fc2 accumulator scratch
            + 8 * tile_m * tile_h)               # f32 fc1/GELU intermediates


def _choose_plan(M, c_in_p, h_p, c_out_p, itemsize, budget,
                 tile_m=None, tile_h=None, force_hchunk=False):
    pack = max(8, 32 // itemsize)                 # sublane packing: 8 f32 / 16 bf16 / 32 i8
    max_tm = _round_up(M, pack)
    if M >= 512:
        # Keep >= 2 row tiles so both v7x TensorCores get work on the "parallel" axis.
        max_tm = min(max_tm, _round_up((M + 1) // 2, pack))

    cands = [t for t in (1024, 768, 512, 384, 256, 128, 64, 32, 16, 8)
             if t % pack == 0 and t <= max_tm]
    cands = sorted(set(cands) | {max_tm}, reverse=True)
    if tile_m is not None:
        cands = [min(max(_round_up(tile_m, pack), pack), max_tm)]

    th_cands = [t for t in (1024, 512, 256, 128) if h_p % t == 0]
    if tile_h is not None and tile_h % 128 == 0 and h_p % tile_h == 0:
        th_cands = [tile_h]

    if not force_hchunk:
        for tm in cands:                          # prefer the largest row tile that fits
            if _resident_bytes(tm, c_in_p, h_p, c_out_p, itemsize) <= budget:
                return "resident", tm, None
    for tm in cands:                              # streamed weights: big tile_m = high AI
        for th in th_cands:
            if _hchunk_bytes(tm, th, c_in_p, c_out_p, itemsize) <= budget:
                return "hchunk", tm, th
    # TODO(synk): add a C_out tile axis for the (huge C_in*H AND huge C_out) corner case.
    return "hchunk", cands[-1], th_cands[-1]


# -----------------------------------------------------------------------------
# Wrapper
# -----------------------------------------------------------------------------

def prepare_mlp_params(w1, b1, w2, b2):
    """Pad parameters to lane-dense (128-multiple) shapes ONCE, at parameter load.

    Weights are stored (in, out) -- transposed vs. PyTorch nn.Linear storage -- so the
    kernel computes plain x @ W + b.
    """
    C_in, H = w1.shape
    C_out = w2.shape[1]
    C_in_p = _round_up(C_in, 128)
    H_p = _round_up(H, 128)
    C_out_p = _round_up(C_out, 128)

    def _pad_to(a, shape):
        if a.shape == shape:
            return a                              # skip the pad when already aligned
        return jnp.pad(a, [(0, s - d) for d, s in zip(a.shape, shape)])

    return {
        "w1": _pad_to(w1, (C_in_p, H_p)),
        "b1": _pad_to(b1.reshape(1, -1), (1, H_p)),
        "w2": _pad_to(w2, (H_p, C_out_p)),
        "b2": _pad_to(b2.reshape(1, -1), (1, C_out_p)),
        "dims": (C_in, H, C_out),
    }


def mlp_apply(params, x, *, tile_m=None, tile_h=None, force_hchunk=False):
    """x: (B, N, C_in) -> (B, N, C_out), using pre-padded params from prepare_mlp_params."""
    C_in, H, C_out = params["dims"]
    w1p, b1p, w2p, b2p = params["w1"], params["b1"], params["w2"], params["b2"]
    C_in_p, H_p = w1p.shape
    C_out_p = w2p.shape[1]

    B, N, _ = x.shape
    M = B * N
    dt = x.dtype
    itemsize = x.dtype.itemsize

    limit, budget = _vmem_limits()
    plan, tm, th = _choose_plan(M, C_in_p, H_p, C_out_p, itemsize, budget,
                                tile_m=tile_m, tile_h=tile_h,
                                force_hchunk=force_hchunk)

    M_p = _round_up(M, tm)
    x2d = x.reshape(M, C_in)
    if (M_p, C_in_p) != (M, C_in):                # pad activations only when misaligned
        x2d = jnp.pad(x2d, ((0, M_p - M), (0, C_in_p - C_in)))

    if plan == "resident":
        grid = (M_p // tm,)
        in_specs = [
            pl.BlockSpec((tm, C_in_p), lambda i: (i, 0)),        # x row tile
            pl.BlockSpec((C_in_p, H_p), lambda i: (0, 0)),       # W1 (resident)
            pl.BlockSpec((1, H_p), lambda i: (0, 0)),            # b1 (resident)
            pl.BlockSpec((H_p, C_out_p), lambda i: (0, 0)),      # W2 (resident)
            pl.BlockSpec((1, C_out_p), lambda i: (0, 0)),        # b2 (resident)
        ]
        out_spec = pl.BlockSpec((tm, C_out_p), lambda i: (i, 0))
        scratch = []
        kernel = _mlp_kernel_resident
        dim_sem = ("parallel",)
        weight_reads = 1                                         # weights read ~once
    else:
        grid = (M_p // tm, H_p // th)
        in_specs = [
            pl.BlockSpec((tm, C_in_p), lambda i, k: (i, 0)),     # x row tile (k-invariant)
            pl.BlockSpec((C_in_p, th), lambda i, k: (0, k)),     # W1 column chunk
            pl.BlockSpec((1, th), lambda i, k: (0, k)),          # b1 chunk
            pl.BlockSpec((th, C_out_p), lambda i, k: (k, 0)),    # W2 row chunk
            pl.BlockSpec((1, C_out_p), lambda i, k: (0, 0)),     # b2 (invariant)
        ]
        out_spec = pl.BlockSpec((tm, C_out_p), lambda i, k: (i, 0))
        scratch = [pltpu.VMEM((tm, C_out_p), jnp.float32)]       # fc2 accumulator
        kernel = _mlp_kernel_hchunk
        # The H-chunk axis carries the accumulator/output state -> must stay sequential.
        dim_sem = ("parallel", "arbitrary")
        weight_reads = grid[0]                                   # re-streamed per row tile

    cost = pl.CostEstimate(
        flops=2 * M_p * C_in_p * H_p + 2 * M_p * H_p * C_out_p,
        transcendentals=M_p * H_p,
        bytes_accessed=(
            x2d.size * itemsize
            + weight_reads * (w1p.size + b1p.size + w2p.size) * itemsize
            + b2p.size * itemsize
            + M_p * C_out_p * itemsize),
    )

    out2d = pl.pallas_call(
        kernel,
        out_shape=jax.ShapeDtypeStruct((M_p, C_out_p), dt),
        grid_spec=pltpu.PrefetchScalarGridSpec(
            num_scalar_prefetch=0,
            grid=grid,
            in_specs=in_specs,
            out_specs=out_spec,
            scratch_shapes=scratch,
        ),
        compiler_params=pltpu.CompilerParams(
            dimension_semantics=dim_sem,
            vmem_limit_bytes=limit,
        ),
        cost_estimate=cost,
    )(x2d, w1p, b1p, w2p, b2p)

    out = out2d
    if (M_p, C_out_p) != (M, C_out):
        out = out2d[:M, :C_out]
    return out.reshape(B, N, C_out)


def mlp_pallas(x, w1, b1, w2, b2, **kwargs):
    """One-shot convenience wrapper (pads parameters per call).  For repeated calls,
    prefer prepare_mlp_params(...) once + mlp_apply(...) to hoist the padding."""
    return mlp_apply(prepare_mlp_params(w1, b1, w2, b2), x, **kwargs)


# -----------------------------------------------------------------------------
# Reference / test
# -----------------------------------------------------------------------------

def _init_linear(key, fan_in, fan_out, dtype=jnp.float32):
    """Deterministic init mimicking nn.Linear default (uniform +/- 1/sqrt(fan_in)).
    Weight returned in (fan_in, fan_out) layout (transposed vs PyTorch storage)."""
    kw, kb = jax.random.split(key)
    bound = 1.0 / math.sqrt(fan_in)
    w = jax.random.uniform(kw, (fan_in, fan_out), dtype, minval=-bound, maxval=bound)
    b = jax.random.uniform(kb, (fan_out,), dtype, minval=-bound, maxval=bound)
    return w, b


def _mlp_reference(x, w1, b1, w2, b2):
    h = jnp.einsum("bnc,ch->bnh", x, w1) + b1
    h = 0.5 * h * (1.0 + jax.lax.erf(h * _INV_SQRT2))
    return jnp.einsum("bnh,ho->bno", h, w2) + b2


if __name__ == "__main__":
    # Small shapes consistent with a transformer MLP block.
    B, N = 2, 8          # batch, tokens
    in_features = 32
    hidden_features = 64
    out_features = 32

    key = jax.random.PRNGKey(0)
    kx, k1, k2 = jax.random.split(key, 3)

    x = jax.random.normal(kx, (B, N, in_features), jnp.float32)
    w1, b1 = _init_linear(k1, in_features, hidden_features)
    w2, b2 = _init_linear(k2, hidden_features, out_features)

    ref = _mlp_reference(x, w1, b1, w2, b2)

    # f32, resident-weight path (the common case): matches exact-erf GELU MLP tightly.
    params = prepare_mlp_params(w1, b1, w2, b2)     # padding hoisted out of the hot path
    out = jax.block_until_ready(mlp_apply(params, x))
    assert out.shape == (B, N, out_features)
    assert jnp.allclose(out, ref, atol=1e-5, rtol=1e-5), "f32 resident mismatch vs reference"

    # bf16 path: operands feed the MXU natively (no f32 upcast of the matmul inputs).
    bf = jnp.bfloat16
    out_bf16 = jax.block_until_ready(
        mlp_pallas(x.astype(bf), w1.astype(bf), b1.astype(bf),
                   w2.astype(bf), b2.astype(bf)))
    assert out_bf16.shape == (B, N, out_features)
    assert jnp.allclose(out_bf16.astype(jnp.float32), ref, atol=5e-2, rtol=5e-2), \
        "bf16 resident mismatch vs reference"

    # H-chunked fallback path (used when W1/W2 are too large for VMEM, e.g. big hidden
    # dims on v7x's 64 MiB) -- forced here at a small shape so it is verified too.
    hidden_big = 256
    k3, k4 = jax.random.split(jax.random.PRNGKey(1))
    w1b, b1b = _init_linear(k3, in_features, hidden_big)
    w2b, b2b = _init_linear(k4, hidden_big, out_features)
    ref_big = _mlp_reference(x, w1b, b1b, w2b, b2b)
    out_big = jax.block_until_ready(
        mlp_pallas(x, w1b, b1b, w2b, b2b, force_hchunk=True, tile_h=128))
    assert out_big.shape == (B, N, out_features)
    assert jnp.allclose(out_big, ref_big, atol=1e-5, rtol=1e-5), \
        "f32 H-chunked mismatch vs reference"

    print("KERNEL_OK")
</pallas_src>

<mosaic_0001>
module attributes {stable_mosaic.version = 11 : i64} {
  func.func @_mlp_kernel_resident(%arg0: i32, %arg1: memref<16x128xf32, #tpu.memory_space<vmem>>, %arg2: memref<128x128xf32, #tpu.memory_space<vmem>>, %arg3: memref<1x128xf32, #tpu.memory_space<vmem>>, %arg4: memref<128x128xf32, #tpu.memory_space<vmem>>, %arg5: memref<1x128xf32, #tpu.memory_space<vmem>>, %arg6: memref<16x128xf32, #tpu.memory_space<vmem>>) attributes {dimension_semantics = [#tpu.dimension_semantics<parallel>], iteration_bounds = array<i64: 1>, scalar_prefetch = 0 : i64, scratch_operands = 0 : i64, tpu.core_type = #tpu.core_type<tc>, window_params = [{transform_indices = @transform_0, window_bounds = array<i64: 16, 128>}, {pipeline_mode = #tpu.pipeline_mode<synchronous>, transform_indices = @transform_1, window_bounds = array<i64: 128, 128>}, {pipeline_mode = #tpu.pipeline_mode<synchronous>, transform_indices = @transform_2, window_bounds = array<i64: 1, 128>}, {pipeline_mode = #tpu.pipeline_mode<synchronous>, transform_indices = @transform_3, window_bounds = array<i64: 128, 128>}, {pipeline_mode = #tpu.pipeline_mode<synchronous>, transform_indices = @transform_4, window_bounds = array<i64: 1, 128>}, {transform_indices = @transform_5, window_bounds = array<i64: 16, 128>}]} {
    %c0 = arith.constant 0 : index
    %c0_0 = arith.constant 0 : index
    %0 = vector.load %arg1[%c0, %c0_0] : memref<16x128xf32, #tpu.memory_space<vmem>>, vector<16x128xf32>
    %c0_1 = arith.constant 0 : index
    %c0_2 = arith.constant 0 : index
    %1 = vector.load %arg2[%c0_1, %c0_2] : memref<128x128xf32, #tpu.memory_space<vmem>>, vector<128x128xf32>
    %cst = arith.constant dense<0.000000e+00> : vector<16x128xf32>
    %2 = tpu.matmul %0, %1, %cst {dimension_numbers = #tpu.dot_dimension_numbers<[1], [0], [0], [1], [0, 0, 1, 1], [], []>} : vector<16x128xf32>, vector<128x128xf32>, vector<16x128xf32> -> vector<16x128xf32>
    %c0_3 = arith.constant 0 : index
    %c0_4 = arith.constant 0 : index
    %3 = vector.load %arg3[%c0_3, %c0_4] : memref<1x128xf32, #tpu.memory_space<vmem>>, vector<1x128xf32>
    %4 = vector.broadcast %3 : vector<1x128xf32> to vector<16x128xf32>
    %5 = arith.addf %2, %4 : vector<16x128xf32>
    %cst_5 = arith.constant 5.000000e-01 : f32
    %6 = vector.broadcast %cst_5 : f32 to vector<16x128xf32>
    %7 = arith.mulf %6, %5 : vector<16x128xf32>
    %cst_6 = arith.constant 0.707106769 : f32
    %8 = vector.broadcast %cst_6 : f32 to vector<16x128xf32>
    %9 = arith.mulf %5, %8 : vector<16x128xf32>
    %10 = math.erf %9 : vector<16x128xf32>
    %cst_7 = arith.constant 1.000000e+00 : f32
    %11 = vector.broadcast %cst_7 : f32 to vector<16x128xf32>
    %12 = arith.addf %11, %10 : vector<16x128xf32>
    %13 = arith.mulf %7, %12 : vector<16x128xf32>
    %c0_8 = arith.constant 0 : index
    %c0_9 = arith.constant 0 : index
    %14 = vector.load %arg4[%c0_8, %c0_9] : memref<128x128xf32, #tpu.memory_space<vmem>>, vector<128x128xf32>
    %cst_10 = arith.constant dense<0.000000e+00> : vector<16x128xf32>
    %15 = tpu.matmul %13, %14, %cst_10 {dimension_numbers = #tpu.dot_dimension_numbers<[1], [0], [0], [1], [0, 0, 1, 1], [], []>} : vector<16x128xf32>, vector<128x128xf32>, vector<16x128xf32> -> vector<16x128xf32>
    %c0_11 = arith.constant 0 : index
    %c0_12 = arith.constant 0 : index
    %16 = vector.load %arg5[%c0_11, %c0_12] : memref<1x128xf32, #tpu.memory_space<vmem>>, vector<1x128xf32>
    %17 = vector.broadcast %16 : vector<1x128xf32> to vector<16x128xf32>
    %18 = arith.addf %15, %17 : vector<16x128xf32>
    %c0_13 = arith.constant 0 : index
    %c0_14 = arith.constant 0 : index
    %19 = vector.load %arg6[%c0_13, %c0_14] : memref<16x128xf32, #tpu.memory_space<vmem>>, vector<16x128xf32>
    tpu.vector_store %arg6[%c0_13, %c0_14], %18 {strides = array<i32>} : memref<16x128xf32, #tpu.memory_space<vmem>>, vector<16x128xf32>,
    return
  }
  func.func @transform_0(%arg0: i32) -> (i32, i32) {
    %c0_i32 = arith.constant 0 : i32
    %c0_i32_0 = arith.constant 0 : i32
    return %arg0, %c0_i32 : i32, i32
  }
  func.func @transform_1(%arg0: i32) -> (i32, i32) {
    %c0_i32 = arith.constant 0 : i32
    %c0_i32_0 = arith.constant 0 : i32
    %c0_i32_1 = arith.constant 0 : i32
    return %c0_i32, %c0_i32_0 : i32, i32
  }
  func.func @transform_2(%arg0: i32) -> (i32, i32) {
    %c0_i32 = arith.constant 0 : i32
    %c0_i32_0 = arith.constant 0 : i32
    %c0_i32_1 = arith.constant 0 : i32
    return %c0_i32, %c0_i32_0 : i32, i32
  }
  func.func @transform_3(%arg0: i32) -> (i32, i32) {
    %c0_i32 = arith.constant 0 : i32
    %c0_i32_0 = arith.constant 0 : i32
    %c0_i32_1 = arith.constant 0 : i32
    return %c0_i32, %c0_i32_0 : i32, i32
  }
  func.func @transform_4(%arg0: i32) -> (i32, i32) {
    %c0_i32 = arith.constant 0 : i32
    %c0_i32_0 = arith.constant 0 : i32
    %c0_i32_1 = arith.constant 0 : i32
    return %c0_i32, %c0_i32_0 : i32, i32
  }
  func.func @transform_5(%arg0: i32) -> (i32, i32) {
    %c0_i32 = arith.constant 0 : i32
    %c0_i32_0 = arith.constant 0 : i32
    return %arg0, %c0_i32 : i32, i32
  }
}

</mosaic_0001>

<llo_original>
// kernel: tpu_custom_call.1
$region0: #{tpu_custom_call.1}
  #allocation0 [shape = 'u32[]', space=smem, size = 0x4, offset = 0x4, fixed_abs, tag = 'smem constant byte address 0x4 - core index']
  #allocation1 [shape = 'u32[144,128]{1,0:T(1,128)}', space=vmem, size = 0x12000, scoped, tag = 'internal scratch']
  %s0 = inlined_call_operand.hbm [shape: f32[16,128], index: 0, kind: input, shape index: {}]
  %s1 = inlined_call_operand.hbm [shape: f32[128,128], index: 1, kind: input, shape index: {}]
  %s2 = inlined_call_operand.vmem [shape: f32[1,128], index: 2, kind: input, shape index: {}]
  %s3 = inlined_call_operand.hbm [shape: f32[128,128], index: 3, kind: input, shape index: {}]
  %s4 = inlined_call_operand.vmem [shape: f32[1,128], index: 4, kind: input, shape index: {}]
  %s5 = inlined_call_operand.hbm [shape: f32[16,128], index: 5, kind: output, shape index: {}]
  %s6 = sld [smem:[#allocation0]]
  $region42: #{tpu_custom_call.1} parent=0
    _
  %s8 = ssub.s32 1, %s6
  %s9 = scalar_select 0, %s8, %s6
  $region1: #{tpu_custom_call.1} parent=0
    #allocation2 [shape = 'u8[8192]{0}', space=vmem, size = 0x2000, scoped, tag = 'input window, operand 0, single buffered']
    #allocation3 [shape = 's32[1]{0}', space=sflag, size = 0x4, scoped, tag = 'scoped memory for tpu_custom_call.1']
    #allocation4 [shape = 's32[1]{0}', space=sflag, size = 0x4, scoped, tag = 'scoped memory for tpu_custom_call.1']
    #allocation5 [shape = 'u8[65536]{0}', space=vmem, size = 0x10000, scoped, tag = 'input window, operand 1, single buffered']
    #allocation6 [shape = 's32[1]{0}', space=sflag, size = 0x4, scoped, tag = 'scoped memory for tpu_custom_call.1']
    #allocation7 [shape = 'u8[65536]{0}', space=vmem, size = 0x10000, scoped, tag = 'input window, operand 3, single buffered']
    #allocation8 [shape = 'u8[8192]{0}', space=vmem, size = 0x2000, scoped, tag = 'output window, operand 0, single buffered']
    %10 = vsyncpa [#allocation3], 0
    %11 = vsyncpa [#allocation6], 0
    %12 = vsyncpa [#allocation4], 0
    // Predicated region
    $region2: #{tpu_custom_call.1} parent=1 // pred_check
      _
    $region3: #{tpu_custom_call.1} parent=1 // pred_check_branch
      %14 = sbr.rel (0) target = $region5
    $region4: #{tpu_custom_call.1} parent=1 // pred_region
      %s16 = ssub.s32 256, 256
      %17 = vsyncadd [#allocation3], %s16
      %s18 = sshll.u32 [#allocation2], 4
      %s19 = int_to_ptr.vmem [resolvable:$true] %s18
      %24 = dma.hbm_to_vmem [thread:$0]  %s0, 256, %s19, [#allocation3], 128, 128, 8
    $region5: #{tpu_custom_call.1} parent=1 // pred_fallthru
      _
    // Predicated region
    $region6: #{tpu_custom_call.1} parent=1 // pred_check
      _
    $region7: #{tpu_custom_call.1} parent=1 // pred_check_branch
      %26 = sbr.rel (0) target = $region9
    $region8: #{tpu_custom_call.1} parent=1 // pred_region
      %s28 = ssub.s32 2048, 2048
      %29 = vsyncadd [#allocation6], %s28
      %s30 = sshll.u32 [#allocation5], 4
      %s31 = int_to_ptr.vmem [resolvable:$true] %s30
      %36 = dma.hbm_to_vmem [thread:$0]  %s1, 2048, %s31, [#allocation6], 128, 128, 8
    $region9: #{tpu_custom_call.1} parent=1 // pred_fallthru
      _
    // Predicated region
    $region10: #{tpu_custom_call.1} parent=1 // pred_check
      _
    $region11: #{tpu_custom_call.1} parent=1 // pred_check_branch
      %38 = sbr.rel (0) target = $region13
    $region12: #{tpu_custom_call.1} parent=1 // pred_region
      _
    $region13: #{tpu_custom_call.1} parent=1 // pred_fallthru
      _
    // Predicated region
    $region14: #{tpu_custom_call.1} parent=1 // pred_check
      _
    $region15: #{tpu_custom_call.1} parent=1 // pred_check_branch
      %40 = sbr.rel (0) target = $region17
    $region16: #{tpu_custom_call.1} parent=1 // pred_region
      %s42 = ssub.s32 2048, 2048
      %43 = vsyncadd [#allocation6], %s42
      %s44 = sshll.u32 [#allocation7], 4
      %s45 = int_to_ptr.vmem [resolvable:$true] %s44
      %50 = dma.hbm_to_vmem [thread:$0]  %s3, 2048, %s45, [#allocation6], 128, 128, 8
    $region17: #{tpu_custom_call.1} parent=1 // pred_fallthru
      _
    // Predicated region
    $region18: #{tpu_custom_call.1} parent=1 // pred_check
      _
    $region19: #{tpu_custom_call.1} parent=1 // pred_check_branch
      %52 = sbr.rel (0) target = $region21
    $region20: #{tpu_custom_call.1} parent=1 // pred_region
      _
    $region21: #{tpu_custom_call.1} parent=1 // pred_fallthru
      _
    // Predicated region
    $region22: #{tpu_custom_call.1} parent=1 // pred_check
      _
    $region23: #{tpu_custom_call.1} parent=1 // pred_check_branch
      %54 = sbr.rel (0) target = $region25
    $region24: #{tpu_custom_call.1} parent=1 // pred_region
      %55 = dma.done [#allocation3], 256
    $region25: #{tpu_custom_call.1} parent=1 // pred_fallthru
      _
    // Predicated region
    $region26: #{tpu_custom_call.1} parent=1 // pred_check
      _
    $region27: #{tpu_custom_call.1} parent=1 // pred_check_branch
      %57 = sbr.rel (0) target = $region29
    $region28: #{tpu_custom_call.1} parent=1 // pred_region
      %58 = dma.done [#allocation6], 2048
    $region29: #{tpu_custom_call.1} parent=1 // pred_fallthru
      _
    // Predicated region
    $region30: #{tpu_custom_call.1} parent=1 // pred_check
      _
    $region31: #{tpu_custom_call.1} parent=1 // pred_check_branch
      %60 = sbr.rel (0) target = $region33
    $region32: #{tpu_custom_call.1} parent=1 // pred_region
      %61 = dma.done [#allocation6], 2048
    $region33: #{tpu_custom_call.1} parent=1 // pred_fallthru
      _
    %v62 = vld [vmem:[#allocation2] sm:$0xff]
    %v63 = vld [vmem:[#allocation2 + $0x8] sm:$0xff]
    %v64 = vld [vmem:[#allocation5] sm:$0xff]
    %v65 = vld [vmem:[#allocation5 + $0x8] sm:$0xff]
    %v66 = vld [vmem:[#allocation5 + $0x10] sm:$0xff]
    %v67 = vld [vmem:[#allocation5 + $0x18] sm:$0xff]
    %v68 = vld [vmem:[#allocation5 + $0x20] sm:$0xff]
    %v69 = vld [vmem:[#allocation5 + $0x28] sm:$0xff]
    %v70 = vld [vmem:[#allocation5 + $0x30] sm:$0xff]
    %v71 = vld [vmem:[#allocation5 + $0x38] sm:$0xff]
    %v72 = vld [vmem:[#allocation5 + $0x40] sm:$0xff]
    %v73 = vld [vmem:[#allocation5 + $0x48] sm:$0xff]
    %v74 = vld [vmem:[#allocation5 + $0x50] sm:$0xff]
    %v75 = vld [vmem:[#allocation5 + $0x58] sm:$0xff]
    %v76 = vld [vmem:[#allocation5 + $0x60] sm:$0xff]
    %v77 = vld [vmem:[#allocation5 + $0x68] sm:$0xff]
    %v78 = vld [vmem:[#allocation5 + $0x70] sm:$0xff]
    %v79 = vld [vmem:[#allocation5 + $0x78] sm:$0xff]
    %v80 = vld [vmem:[%s2] sm:$0x1]
    %v82 = vlaneseq
    %v83 = vshrl.u32 %v82, 7
    %v84 = vsub.s32 0, %v83
    %v85 = vrot.slane %v80, %v84
    %87 = vmatprep.subr.mxu0 0.0
    %88 = vmatpush1.msra.mxu0 %v79
    %89 = vmatprep.subr.mxu0 0.0
    %90 = vmatpush1.msra.mxu0 %v78
    %91 = vmatprep.subr.mxu0 0.0
    %92 = vmatpush1.msra.mxu0 %v77
    %93 = vmatprep.subr.mxu0 0.0
    %94 = vmatpush1.msra.mxu0 %v76
    %95 = vmatprep.subr.mxu0 0.0
    %96 = vmatpush1.msra.mxu0 %v75
    %97 = vmatprep.subr.mxu0 0.0
    %98 = vmatpush1.msra.mxu0 %v74
    %99 = vmatprep.subr.mxu0 0.0
    %100 = vmatpush1.msra.mxu0 %v73
    %101 = vmatprep.subr.mxu0 0.0
    %102 = vmatpush1.msra.mxu0 %v72
    %103 = vmatprep.subr.mxu0 0.0
    %104 = vmatpush1.msra.mxu0 %v71
    %105 = vmatprep.subr.mxu0 0.0
    %106 = vmatpush1.msra.mxu0 %v70
    %107 = vmatprep.subr.mxu0 0.0
    %108 = vmatpush1.msra.mxu0 %v69
    %109 = vmatprep.subr.mxu0 0.0
    %110 = vmatpush1.msra.mxu0 %v68
    %111 = vmatprep.subr.mxu0 0.0
    %112 = vmatpush1.msra.mxu0 %v67
    %113 = vmatprep.subr.mxu0 0.0
    %114 = vmatpush1.msra.mxu0 %v66
    %115 = vmatprep.subr.mxu0 0.0
    %116 = vmatpush1.msra.mxu0 %v65
    %117 = vmatprep.subr.mxu0 0.0
    %118 = vmatpush1.msra.mxu0 %v64
    %119 = vmatprep.subr.mxu0 0.0
    %120 = vmatpush2.msra.mxu0 0.0
    %121 = vmatprep.subr.mxu0 0.0
    %122 = vmatpush2.msra.mxu0 0.0
    %123 = vmatprep.subr.mxu0 0.0
    %124 = vmatpush2.msra.mxu0 0.0
    %125 = vmatprep.subr.mxu0 0.0
    %126 = vmatpush2.msra.mxu0 0.0
    %127 = vmatprep.subr.mxu0 0.0
    %128 = vmatpush2.msra.mxu0 0.0
    %129 = vmatprep.subr.mxu0 0.0
    %130 = vmatpush2.msra.mxu0 0.0
    %131 = vmatprep.subr.mxu0 0.0
    %132 = vmatpush2.msra.mxu0 0.0
    %133 = vmatprep.subr.mxu0 0.0
    %134 = vmatpush2.msra.mxu0 0.0
    %135 = vmatprep.subr.mxu0 0.0
    %136 = vmatpush2.msra.mxu0 0.0
    %137 = vmatprep.subr.mxu0 0.0
    %138 = vmatpush2.msra.mxu0 0.0
    %139 = vmatprep.subr.mxu0 0.0
    %140 = vmatpush2.msra.mxu0 0.0
    %141 = vmatprep.subr.mxu0 0.0
    %142 = vmatpush2.msra.mxu0 0.0
    %143 = vmatprep.subr.mxu0 0.0
    %144 = vmatpush2.msra.mxu0 0.0
    %145 = vmatprep.subr.mxu0 0.0
    %146 = vmatpush2.msra.mxu0 0.0
    %147 = vmatprep.subr.mxu0 0.0
    %148 = vmatpush2.msra.mxu0 0.0
    %149 = vmatprep.subr.mxu0 0.0
    %150 = vmatpush2.msra.mxu0 0.0
    %151 = vmatprep.mubr.f32.mxu0 0.0
    %152 = vmatmul.mubr.f32.gmra.mxu0 %v62
    %v153 = vpop.f32.mrf.mxu0
    %v154 = vadd.f32 %v85, %v153
    %v155 = vpop.f32.mrf.mxu0
    %156 = vmatprep.mubr.f32.mxu0 0.0
    %157 = vmatmul.mubr.f32.gmra.mxu0 %v63
    %v158 = vpop.f32.mrf.mxu0
    %v159 = vadd.f32 %v85, %v158
    %v160 = vpop.f32.mrf.mxu0
    %161 = vdwg.mxu0
    %v162 = vmul.f32 %v154, 0.5
    %v163 = vmul.f32 %v159, 0.5
    %v164 = vmul.f32 %v154, 0.70710677
    %v165 = vmul.f32 %v159, 0.70710677
    %v166 = verf.f32.pop %v164
    %v167 = verf.f32.pop %v165
    %v168 = vadd.f32 %v166, 1.0
    %v169 = vadd.f32 %v167, 1.0
    %v170 = vmul.f32 %v162, %v168
    %v171 = vmul.f32 %v163, %v169
    %v172 = vld [vmem:[#allocation7] sm:$0xff]
    %v173 = vld [vmem:[#allocation7 + $0x8] sm:$0xff]
    %v174 = vld [vmem:[#allocation7 + $0x10] sm:$0xff]
    %v175 = vld [vmem:[#allocation7 + $0x18] sm:$0xff]
    %v176 = vld [vmem:[#allocation7 + $0x20] sm:$0xff]
    %v177 = vld [vmem:[#allocation7 + $0x28] sm:$0xff]
    %v178 = vld [vmem:[#allocation7 + $0x30] sm:$0xff]
    %v179 = vld [vmem:[#allocation7 + $0x38] sm:$0xff]
    %v180 = vld [vmem:[#allocation7 + $0x40] sm:$0xff]
    %v181 = vld [vmem:[#allocation7 + $0x48] sm:$0xff]
    %v182 = vld [vmem:[#allocation7 + $0x50] sm:$0xff]
    %v183 = vld [vmem:[#allocation7 + $0x58] sm:$0xff]
    %v184 = vld [vmem:[#allocation7 + $0x60] sm:$0xff]
    %v185 = vld [vmem:[#allocation7 + $0x68] sm:$0xff]
    %v186 = vld [vmem:[#allocation7 + $0x70] sm:$0xff]
    %v187 = vld [vmem:[#allocation7 + $0x78] sm:$0xff]
    %v188 = vld [vmem:[%s4] sm:$0x1]
    %v190 = vlaneseq
    %v191 = vshrl.u32 %v190, 7
    %v192 = vsub.s32 0, %v191
    %v193 = vrot.slane %v188, %v192
    %195 = vmatprep.subr.mxu0 0.0
    %196 = vmatpush1.msra.mxu0 %v187
    %197 = vmatprep.subr.mxu0 0.0
    %198 = vmatpush1.msra.mxu0 %v186
    %199 = vmatprep.subr.mxu0 0.0
    %200 = vmatpush1.msra.mxu0 %v185
    %201 = vmatprep.subr.mxu0 0.0
    %202 = vmatpush1.msra.mxu0 %v184
    %203 = vmatprep.subr.mxu0 0.0
    %204 = vmatpush1.msra.mxu0 %v183
    %205 = vmatprep.subr.mxu0 0.0
    %206 = vmatpush1.msra.mxu0 %v182
    %207 = vmatprep.subr.mxu0 0.0
    %208 = vmatpush1.msra.mxu0 %v181
    %209 = vmatprep.subr.mxu0 0.0
    %210 = vmatpush1.msra.mxu0 %v180
    %211 = vmatprep.subr.mxu0 0.0
    %212 = vmatpush1.msra.mxu0 %v179
    %213 = vmatprep.subr.mxu0 0.0
    %214 = vmatpush1.msra.mxu0 %v178
    %215 = vmatprep.subr.mxu0 0.0
    %216 = vmatpush1.msra.mxu0 %v177
    %217 = vmatprep.subr.mxu0 0.0
    %218 = vmatpush1.msra.mxu0 %v176
    %219 = vmatprep.subr.mxu0 0.0
    %220 = vmatpush1.msra.mxu0 %v175
    %221 = vmatprep.subr.mxu0 0.0
    %222 = vmatpush1.msra.mxu0 %v174
    %223 = vmatprep.subr.mxu0 0.0
    %224 = vmatpush1.msra.mxu0 %v173
    %225 = vmatprep.subr.mxu0 0.0
    %226 = vmatpush1.msra.mxu0 %v172
    %227 = vmatprep.subr.mxu0 0.0
    %228 = vmatpush2.msra.mxu0 0.0
    %229 = vmatprep.subr.mxu0 0.0
    %230 = vmatpush2.msra.mxu0 0.0
    %231 = vmatprep.subr.mxu0 0.0
    %232 = vmatpush2.msra.mxu0 0.0
    %233 = vmatprep.subr.mxu0 0.0
    %234 = vmatpush2.msra.mxu0 0.0
    %235 = vmatprep.subr.mxu0 0.0
    %236 = vmatpush2.msra.mxu0 0.0
    %237 = vmatprep.subr.mxu0 0.0
    %238 = vmatpush2.msra.mxu0 0.0
    %239 = vmatprep.subr.mxu0 0.0
    %240 = vmatpush2.msra.mxu0 0.0
    %241 = vmatprep.subr.mxu0 0.0
    %242 = vmatpush2.msra.mxu0 0.0
    %243 = vmatprep.subr.mxu0 0.0
    %244 = vmatpush2.msra.mxu0 0.0
    %245 = vmatprep.subr.mxu0 0.0
    %246 = vmatpush2.msra.mxu0 0.0
    %247 = vmatprep.subr.mxu0 0.0
    %248 = vmatpush2.msra.mxu0 0.0
    %249 = vmatprep.subr.mxu0 0.0
    %250 = vmatpush2.msra.mxu0 0.0
    %251 = vmatprep.subr.mxu0 0.0
    %252 = vmatpush2.msra.mxu0 0.0
    %253 = vmatprep.subr.mxu0 0.0
    %254 = vmatpush2.msra.mxu0 0.0
    %255 = vmatprep.subr.mxu0 0.0
    %256 = vmatpush2.msra.mxu0 0.0
    %257 = vmatprep.subr.mxu0 0.0
    %258 = vmatpush2.msra.mxu0 0.0
    %259 = vmatprep.mubr.f32.mxu0 0.0
    %260 = vmatmul.mubr.f32.gmra.mxu0 %v170
    %v261 = vpop.f32.mrf.mxu0
    %v262 = vadd.f32 %v193, %v261
    %v263 = vpop.f32.mrf.mxu0
    %264 = vmatprep.mubr.f32.mxu0 0.0
    %265 = vmatmul.mubr.f32.gmra.mxu0 %v171
    %v266 = vpop.f32.mrf.mxu0
    %v267 = vadd.f32 %v193, %v266
    %v268 = vpop.f32.mrf.mxu0
    %269 = vdwg.mxu0
    %270 = vst [vmem:[#allocation8] sm:$0xff] %v262
    %271 = vst [vmem:[#allocation8 + $0x8] sm:$0xff] %v267
    // Predicated region
    $region34: #{tpu_custom_call.1} parent=1 // pred_check
      _
    $region35: #{tpu_custom_call.1} parent=1 // pred_check_branch
      %273 = sbr.rel (0) target = $region37
    $region36: #{tpu_custom_call.1} parent=1 // pred_region
      %s275 = ssub.s32 256, 256
      %276 = vsyncadd [#allocation4], %s275
      %s277 = sshll.u32 [#allocation8], 4
      %s278 = int_to_ptr.vmem [resolvable:$true] %s277
      %283 = dma.vmem_to_hbm [thread:$0]  %s278, 256, %s5, [#allocation4], 128, 128, 8
    $region37: #{tpu_custom_call.1} parent=1 // pred_fallthru
      _
    // Predicated region
    $region38: #{tpu_custom_call.1} parent=1 // pred_check
      _
    $region39: #{tpu_custom_call.1} parent=1 // pred_check_branch
      %285 = sbr.rel (0) target = $region41
    $region40: #{tpu_custom_call.1} parent=1 // pred_region
      %286 = dma.done [#allocation4], 256
    $region41: #{tpu_custom_call.1} parent=1 // pred_fallthru
      _
    %287 = vsyncpa [#allocation3], 1
    %288 = vsyncpa [#allocation6], 1
    %289 = vsyncpa [#allocation4], 1

</llo_original>
